<compile_context>
chip_gen: v5e
topology: v5e:2x2
jax: 0.10.0
libtpu: 0.0.40
codegen_flags: <defaults>
</compile_context>

<pallas_src>
import jax
import jax.numpy as jnp
from jax.experimental import pallas as pl
from jax.experimental.pallas import tpu as pltpu


def _round_up(a: int, b: int) -> int:
    return ((a + b - 1) // b) * b


def _gcn_pool_lin_kernel(ahat_ref, x_ref, p_ref, wc_ref, bias_ref, out_ref,
                         acc_ref):
    """Per row-tile: h = A_hat_tile @ X ; acc += P_tile @ h.

    Last grid step applies the fused Linear head:
        out = acc @ Wc + bias      (Wc = W1 @ W2^T, bias = counts*(b1@W2^T) + b2)
    """
    i = pl.program_id(0)

    @pl.when(i == 0)
    def _init():
        acc_ref[...] = jnp.zeros_like(acc_ref)

    # [TM, N] @ [N, F] -> [TM, F]   (bf16 operands, f32 accumulation on the MXU)
    h = jnp.dot(ahat_ref[...], x_ref[...], preferred_element_type=jnp.float32)
    # Fold global_add_pool into the reduction: [G, TM] @ [TM, F] -> [G, F]
    acc_ref[...] += jnp.dot(p_ref[...], h, preferred_element_type=jnp.float32)

    @pl.when(i == pl.num_programs(0) - 1)
    def _finalize():
        out = jnp.dot(acc_ref[...], wc_ref[...],
                      preferred_element_type=jnp.float32) + bias_ref[...]
        out_ref[...] = out.astype(out_ref.dtype)


def mock_torch_student_forward(node_input, edge_input, edge_index, batch,
                               params, num_graphs, *, row_tile=512):
    """Glue: build normalized adjacency + pooling matrix, fuse the head, tile."""
    N, F = node_input.shape
    src, dst = edge_index[0], edge_index[1]

    # --- GCN normalization (PyG GCNConv defaults: add_self_loops, normalize) ---
    loop_idx = jnp.arange(N, dtype=src.dtype)
    src_sl = jnp.concatenate([src, loop_idx])
    dst_sl = jnp.concatenate([dst, loop_idx])
    w_sl = jnp.concatenate([edge_input.astype(jnp.float32),
                            jnp.ones((N,), jnp.float32)])

    # Dense weighted adjacency A[dst, src] += w ; A_hat = D^-1/2 A D^-1/2
    # TODO(synk): for large real graphs replace this O(N^2) densification with a
    # sparse CSR gather/scatter path (PrefetchScalarGridSpec + manual DMA).
    A = jnp.zeros((N, N), jnp.float32).at[dst_sl, src_sl].add(w_sl)
    deg = jnp.sum(A, axis=1)
    dis = jnp.where(deg > 0, 1.0 / jnp.sqrt(deg), 0.0)
    A_hat = dis[:, None] * A * dis[None, :]

    # Dense pooling matrix P[g, n] = 1[batch[n] == g] and per-graph node counts.
    P = (batch[None, :] ==
         jnp.arange(num_graphs, dtype=batch.dtype)[:, None]).astype(jnp.float32)
    counts = jnp.sum(P, axis=1)

    w1, b1, w2, b2 = params["w1"], params["b1"], params["w2"], params["b2"]
    O = w2.shape[0]

    # Fuse the Linear head into the conv (valid: no activation between layers).
    wc = (w1 @ w2.T).astype(jnp.float32)                              # [F, O]
    bias_go = counts[:, None] * (b1 @ w2.T)[None, :] + b2[None, :]    # [G, O]

    # --- pad / tile the node dimension ---
    n8 = _round_up(N, 8)
    if n8 <= row_tile:
        tm = n8
        n_pad = n8
    else:
        assert row_tile % 128 == 0, "row_tile must be a multiple of 128"
        tm = row_tile
        n_pad = _round_up(N, tm)
    pad = n_pad - N

    A_hat_p = jnp.pad(A_hat, ((0, pad), (0, pad))).astype(jnp.bfloat16)
    x_p = jnp.pad(node_input.astype(jnp.float32),
                  ((0, pad), (0, 0))).astype(jnp.bfloat16)
    P_p = jnp.pad(P, ((0, 0), (0, pad)))

    grid = (n_pad // tm,)

    # VMEM budget: double-buffered bf16 A_hat row tiles dominate; add headroom.
    tile_bytes = 2 * (tm * n_pad * 2) + n_pad * F * 2 + 2 * (num_graphs * tm * 4)
    vmem_limit = int(1.5 * tile_bytes) + (16 << 20)

    out = pl.pallas_call(
        _gcn_pool_lin_kernel,
        out_shape=jax.ShapeDtypeStruct((num_graphs, O), jnp.float32),
        grid_spec=pltpu.PrefetchScalarGridSpec(
            num_scalar_prefetch=0,
            grid=grid,
            in_specs=[
                pl.BlockSpec((tm, n_pad), lambda i: (i, 0)),        # A_hat row tile
                pl.BlockSpec((n_pad, F), lambda i: (0, 0)),         # X (resident)
                pl.BlockSpec((num_graphs, tm), lambda i: (0, i)),   # P column tile
                pl.BlockSpec((F, O), lambda i: (0, 0)),             # Wc = W1 @ W2^T
                pl.BlockSpec((num_graphs, O), lambda i: (0, 0)),    # fused bias
            ],
            out_specs=pl.BlockSpec((num_graphs, O), lambda i: (0, 0)),
            scratch_shapes=[pltpu.VMEM((num_graphs, F), jnp.float32)],
        ),
        compiler_params=pltpu.CompilerParams(
            dimension_semantics=("arbitrary",),   # reduction axis (shared acc)
            vmem_limit_bytes=vmem_limit,
        ),
    )(A_hat_p, x_p, P_p, wc, bias_go)
    return out


def _reference_forward(node_input, edge_input, edge_index, batch, params,
                       num_graphs):
    """Pure-JAX f32 reference replicating PyG GCNConv + global_add_pool + Linear."""
    N = node_input.shape[0]
    src, dst = edge_index[0], edge_index[1]
    loop = jnp.arange(N, dtype=src.dtype)
    src_sl = jnp.concatenate([src, loop])
    dst_sl = jnp.concatenate([dst, loop])
    w_sl = jnp.concatenate([edge_input.astype(jnp.float32),
                            jnp.ones((N,), jnp.float32)])
    deg = jnp.zeros((N,), jnp.float32).at[dst_sl].add(w_sl)
    dis = jnp.where(deg > 0, 1.0 / jnp.sqrt(deg), 0.0)
    norm = dis[dst_sl] * w_sl * dis[src_sl]
    xw = node_input.astype(jnp.float32) @ params["w1"]
    h = jnp.zeros_like(xw).at[dst_sl].add(norm[:, None] * xw[src_sl]) + params["b1"]
    g = jnp.zeros((num_graphs, h.shape[1]), jnp.float32).at[batch].add(h)
    return g @ params["w2"].T + params["b2"]


if __name__ == "__main__":
    key = jax.random.PRNGKey(0)

    # small, module-consistent shapes
    input_units, hidden_units, output_units = 4, 32, 8
    N, E, G = 16, 24, 2

    k = jax.random.split(key, 8)
    node_input = jax.random.normal(k[0], (N, input_units), jnp.float32)
    edge_input = jax.random.uniform(k[1], (E,), jnp.float32, minval=0.1, maxval=1.0)
    src = jax.random.randint(k[2], (E,), 0, N, dtype=jnp.int32)
    dst = jax.random.randint(k[3], (E,), 0, N, dtype=jnp.int32)
    edge_index = jnp.stack([src, dst], axis=0)                       # [2, E]
    batch = jnp.concatenate([jnp.zeros(N // 2, jnp.int32),
                             jnp.ones(N - N // 2, jnp.int32)])       # [N]

    # deterministic parameters (GCNConv weight/bias, Linear weight/bias)
    params = {
        "w1": jax.random.normal(k[4], (input_units, hidden_units), jnp.float32) * 0.1,
        "b1": jax.random.normal(k[5], (hidden_units,), jnp.float32) * 0.01,
        "w2": jax.random.normal(k[6], (output_units, hidden_units), jnp.float32) * 0.1,
        "b2": jax.random.normal(k[7], (output_units,), jnp.float32) * 0.01,
    }

    out = mock_torch_student_forward(node_input, edge_input, edge_index, batch,
                                     params, num_graphs=G)
    out = jax.block_until_ready(out)

    ref = _reference_forward(node_input, edge_input, edge_index, batch, params, G)
    assert out.shape == (G, output_units)
    # bf16 operands on the A_hat @ X matmul (f32 accumulation) -> loose tolerance.
    assert jnp.allclose(out, ref, atol=5e-2, rtol=5e-2), "mismatch vs reference"
    print("KERNEL_OK")
</pallas_src>

<mosaic_0001>
module attributes {stable_mosaic.version = 11 : i64} {
  func.func @_gcn_pool_lin_kernel(%arg0: i32, %arg1: memref<16x16xbf16, #tpu.memory_space<vmem>>, %arg2: memref<16x4xbf16, #tpu.memory_space<vmem>>, %arg3: memref<2x16xf32, #tpu.memory_space<vmem>>, %arg4: memref<4x8xf32, #tpu.memory_space<vmem>>, %arg5: memref<2x8xf32, #tpu.memory_space<vmem>>, %arg6: memref<2x8xf32, #tpu.memory_space<vmem>>, %arg7: memref<2x4xf32, #tpu.memory_space<vmem>>) attributes {dimension_semantics = [#tpu.dimension_semantics<arbitrary>], iteration_bounds = array<i64: 1>, scalar_prefetch = 0 : i64, scratch_operands = 1 : i64, tpu.core_type = #tpu.core_type<tc>, window_params = [{transform_indices = @transform_0, window_bounds = array<i64: 16, 16>}, {pipeline_mode = #tpu.pipeline_mode<synchronous>, transform_indices = @transform_1, window_bounds = array<i64: 16, 4>}, {transform_indices = @transform_2, window_bounds = array<i64: 2, 16>}, {pipeline_mode = #tpu.pipeline_mode<synchronous>, transform_indices = @transform_3, window_bounds = array<i64: 4, 8>}, {pipeline_mode = #tpu.pipeline_mode<synchronous>, transform_indices = @transform_4, window_bounds = array<i64: 2, 8>}, {pipeline_mode = #tpu.pipeline_mode<synchronous>, transform_indices = @transform_5, window_bounds = array<i64: 2, 8>}]} {
    %c0_i32 = arith.constant 0 : i32
    %0 = arith.cmpi eq, %arg0, %c0_i32 : i32
    %1 = arith.extui %0 : i1 to i32
    %c0_i32_0 = arith.constant 0 : i32
    %2 = arith.cmpi ne, %1, %c0_i32_0 : i32
    scf.if %2 {
      %cst_13 = arith.constant 0.000000e+00 : f32
      %14 = vector.broadcast %cst_13 : f32 to vector<2x4xf32>
      %c0_14 = arith.constant 0 : index
      %c0_15 = arith.constant 0 : index
      %15 = vector.load %arg7[%c0_14, %c0_15] : memref<2x4xf32, #tpu.memory_space<vmem>>, vector<2x4xf32>
      tpu.vector_store %arg7[%c0_14, %c0_15], %14 {strides = array<i32>} : memref<2x4xf32, #tpu.memory_space<vmem>>, vector<2x4xf32>,
    } else {
    }
    %c0 = arith.constant 0 : index
    %c0_1 = arith.constant 0 : index
    %3 = vector.load %arg1[%c0, %c0_1] : memref<16x16xbf16, #tpu.memory_space<vmem>>, vector<16x16xbf16>
    %c0_2 = arith.constant 0 : index
    %c0_3 = arith.constant 0 : index
    %4 = vector.load %arg2[%c0_2, %c0_3] : memref<16x4xbf16, #tpu.memory_space<vmem>>, vector<16x4xbf16>
    %cst = arith.constant dense<0.000000e+00> : vector<16x4xf32>
    %5 = tpu.matmul %3, %4, %cst {dimension_numbers = #tpu.dot_dimension_numbers<[1], [0], [0], [1], [0, 0, 1, 1], [], []>} : vector<16x16xbf16>, vector<16x4xbf16>, vector<16x4xf32> -> vector<16x4xf32>
    %c0_4 = arith.constant 0 : index
    %c0_5 = arith.constant 0 : index
    %6 = vector.load %arg7[%c0_4, %c0_5] : memref<2x4xf32, #tpu.memory_space<vmem>>, vector<2x4xf32>
    %c0_6 = arith.constant 0 : index
    %c0_7 = arith.constant 0 : index
    %7 = vector.load %arg3[%c0_6, %c0_7] : memref<2x16xf32, #tpu.memory_space<vmem>>, vector<2x16xf32>
    %cst_8 = arith.constant dense<0.000000e+00> : vector<2x4xf32>
    %8 = tpu.matmul %7, %5, %cst_8 {dimension_numbers = #tpu.dot_dimension_numbers<[1], [0], [0], [1], [0, 0, 1, 1], [], []>} : vector<2x16xf32>, vector<16x4xf32>, vector<2x4xf32> -> vector<2x4xf32>
    %9 = arith.addf %6, %8 : vector<2x4xf32>
    %c0_9 = arith.constant 0 : index
    %c0_10 = arith.constant 0 : index
    %10 = vector.load %arg7[%c0_9, %c0_10] : memref<2x4xf32, #tpu.memory_space<vmem>>, vector<2x4xf32>
    tpu.vector_store %arg7[%c0_9, %c0_10], %9 {strides = array<i32>} : memref<2x4xf32, #tpu.memory_space<vmem>>, vector<2x4xf32>,
    %c0_i32_11 = arith.constant 0 : i32
    %11 = arith.cmpi eq, %arg0, %c0_i32_11 : i32
    %12 = arith.extui %11 : i1 to i32
    %c0_i32_12 = arith.constant 0 : i32
    %13 = arith.cmpi ne, %12, %c0_i32_12 : i32
    scf.if %13 {
      %c0_13 = arith.constant 0 : index
      %c0_14 = arith.constant 0 : index
      %14 = vector.load %arg7[%c0_13, %c0_14] : memref<2x4xf32, #tpu.memory_space<vmem>>, vector<2x4xf32>
      %c0_15 = arith.constant 0 : index
      %c0_16 = arith.constant 0 : index
      %15 = vector.load %arg4[%c0_15, %c0_16] : memref<4x8xf32, #tpu.memory_space<vmem>>, vector<4x8xf32>
      %cst_17 = arith.constant dense<0.000000e+00> : vector<2x8xf32>
      %16 = tpu.matmul %14, %15, %cst_17 {dimension_numbers = #tpu.dot_dimension_numbers<[1], [0], [0], [1], [0, 0, 1, 1], [], []>} : vector<2x4xf32>, vector<4x8xf32>, vector<2x8xf32> -> vector<2x8xf32>
      %c0_18 = arith.constant 0 : index
      %c0_19 = arith.constant 0 : index
      %17 = vector.load %arg5[%c0_18, %c0_19] : memref<2x8xf32, #tpu.memory_space<vmem>>, vector<2x8xf32>
      %18 = arith.addf %16, %17 : vector<2x8xf32>
      %c0_20 = arith.constant 0 : index
      %c0_21 = arith.constant 0 : index
      %19 = vector.load %arg6[%c0_20, %c0_21] : memref<2x8xf32, #tpu.memory_space<vmem>>, vector<2x8xf32>
      tpu.vector_store %arg6[%c0_20, %c0_21], %18 {strides = array<i32>} : memref<2x8xf32, #tpu.memory_space<vmem>>, vector<2x8xf32>,
    } else {
    }
    return
  }
  func.func @transform_0(%arg0: i32) -> (i32, i32) {
    %c0_i32 = arith.constant 0 : i32
    %c0_i32_0 = arith.constant 0 : i32
    return %arg0, %c0_i32 : i32, i32
  }
  func.func @transform_1(%arg0: i32) -> (i32, i32) {
    %c0_i32 = arith.constant 0 : i32
    %c0_i32_0 = arith.constant 0 : i32
    %c0_i32_1 = arith.constant 0 : i32
    return %c0_i32, %c0_i32_0 : i32, i32
  }
  func.func @transform_2(%arg0: i32) -> (i32, i32) {
    %c0_i32 = arith.constant 0 : i32
    %c0_i32_0 = arith.constant 0 : i32
    return %c0_i32, %arg0 : i32, i32
  }
  func.func @transform_3(%arg0: i32) -> (i32, i32) {
    %c0_i32 = arith.constant 0 : i32
    %c0_i32_0 = arith.constant 0 : i32
    %c0_i32_1 = arith.constant 0 : i32
    return %c0_i32, %c0_i32_0 : i32, i32
  }
  func.func @transform_4(%arg0: i32) -> (i32, i32) {
    %c0_i32 = arith.constant 0 : i32
    %c0_i32_0 = arith.constant 0 : i32
    %c0_i32_1 = arith.constant 0 : i32
    return %c0_i32, %c0_i32_0 : i32, i32
  }
  func.func @transform_5(%arg0: i32) -> (i32, i32) {
    %c0_i32 = arith.constant 0 : i32
    %c0_i32_0 = arith.constant 0 : i32
    %c0_i32_1 = arith.constant 0 : i32
    return %c0_i32, %c0_i32_0 : i32, i32
  }
}

</mosaic_0001>

<llo_original>
// kernel: tpu_custom_call.1
$region0: #{tpu_custom_call.1}
  #allocation0 [shape = 'u32[]', space=smem, size = 0x4, offset = 0x4, fixed_abs, tag = 'smem constant byte address 0x4 - core index']
  #allocation1 [shape = 'u32[72,128]{1,0:T(1,128)}', space=vmem, size = 0x9000, scoped, tag = 'internal scratch']
  #allocation2 [shape = 'f32[2,4]{1,0:T(2,128)}', space=vmem, size = 0x400, scoped, tag = 'scratch operand']
  %s0 = inlined_call_operand.vmem [shape: bf16[16,16], index: 0, kind: input, shape index: {}]
  %s1 = inlined_call_operand.vmem [shape: bf16[16,4], index: 1, kind: input, shape index: {}]
  %s2 = inlined_call_operand.hbm [shape: f32[2,16], index: 2, kind: input, shape index: {}]
  %s3 = inlined_call_operand.vmem [shape: f32[4,8], index: 3, kind: input, shape index: {}]
  %s4 = inlined_call_operand.hbm [shape: f32[2,8], index: 4, kind: input, shape index: {}]
  %s5 = inlined_call_operand.hbm [shape: f32[2,8], index: 5, kind: output, shape index: {}]
  %s6 = sld [smem:[#allocation0]]
  $region46: #{tpu_custom_call.1} parent=0
    _
  %s8 = ssub.s32 1, %s6
  %s9 = scalar_select 0, %s8, %s6
  $region1: #{tpu_custom_call.1} parent=0
    #allocation3 [shape = 'u8[1024]{0}', space=vmem, size = 0x400, scoped, tag = 'input window, operand 2, single buffered']
    #allocation4 [shape = 's32[1]{0}', space=sflag, size = 0x4, scoped, tag = 'scoped memory for tpu_custom_call.1']
    #allocation5 [shape = 's32[1]{0}', space=sflag, size = 0x4, scoped, tag = 'scoped memory for tpu_custom_call.1']
    #allocation6 [shape = 'u8[1024]{0}', space=vmem, size = 0x400, scoped, tag = 'input window, operand 4, single buffered']
    #allocation7 [shape = 's32[1]{0}', space=sflag, size = 0x4, scoped, tag = 'scoped memory for tpu_custom_call.1']
    #allocation8 [shape = 'u8[1024]{0}', space=vmem, size = 0x400, scoped, tag = 'output window, operand 0, single buffered']
    %10 = vsyncpa [#allocation4], 0
    %11 = vsyncpa [#allocation7], 0
    %12 = vsyncpa [#allocation5], 0
    // Predicated region
    $region2: #{tpu_custom_call.1} parent=1 // pred_check
      _
    $region3: #{tpu_custom_call.1} parent=1 // pred_check_branch
      %14 = sbr.rel (0) target = $region5
    $region4: #{tpu_custom_call.1} parent=1 // pred_region
      _
    $region5: #{tpu_custom_call.1} parent=1 // pred_fallthru
      _
    // Predicated region
    $region6: #{tpu_custom_call.1} parent=1 // pred_check
      _
    $region7: #{tpu_custom_call.1} parent=1 // pred_check_branch
      %16 = sbr.rel (0) target = $region9
    $region8: #{tpu_custom_call.1} parent=1 // pred_region
      _
    $region9: #{tpu_custom_call.1} parent=1 // pred_fallthru
      _
    // Predicated region
    $region10: #{tpu_custom_call.1} parent=1 // pred_check
      _
    $region11: #{tpu_custom_call.1} parent=1 // pred_check_branch
      %18 = sbr.rel (0) target = $region13
    $region12: #{tpu_custom_call.1} parent=1 // pred_region
      %20 = vsyncadd [#allocation4], 0
      %s22 = sshll.u32 %s2, 4
      %s23 = int_to_ptr.hbm [resolvable:$true] %s22
      %s24 = sshll.u32 [#allocation3], 4
      %s25 = int_to_ptr.vmem [resolvable:$true] %s24
      %27 = dma.hbm_to_vmem [thread:$0]  %s23, 32, %s25, [#allocation4]
    $region13: #{tpu_custom_call.1} parent=1 // pred_fallthru
      _
    // Predicated region
    $region14: #{tpu_custom_call.1} parent=1 // pred_check
      _
    $region15: #{tpu_custom_call.1} parent=1 // pred_check_branch
      %29 = sbr.rel (0) target = $region17
    $region16: #{tpu_custom_call.1} parent=1 // pred_region
      _
    $region17: #{tpu_custom_call.1} parent=1 // pred_fallthru
      _
    // Predicated region
    $region18: #{tpu_custom_call.1} parent=1 // pred_check
      _
    $region19: #{tpu_custom_call.1} parent=1 // pred_check_branch
      %31 = sbr.rel (0) target = $region21
    $region20: #{tpu_custom_call.1} parent=1 // pred_region
      %33 = vsyncadd [#allocation7], 0
      %s35 = sshll.u32 %s4, 4
      %s36 = int_to_ptr.hbm [resolvable:$true] %s35
      %s37 = sshll.u32 [#allocation6], 4
      %s38 = int_to_ptr.vmem [resolvable:$true] %s37
      %40 = dma.hbm_to_vmem [thread:$0]  %s36, 32, %s38, [#allocation7]
    $region21: #{tpu_custom_call.1} parent=1 // pred_fallthru
      _
    // Predicated region
    $region22: #{tpu_custom_call.1} parent=1 // pred_check
      _
    $region23: #{tpu_custom_call.1} parent=1 // pred_check_branch
      %42 = sbr.rel (0) target = $region25
    $region24: #{tpu_custom_call.1} parent=1 // pred_region
      %44 = dma.done [#allocation4], 32
    $region25: #{tpu_custom_call.1} parent=1 // pred_fallthru
      _
    // Predicated region
    $region26: #{tpu_custom_call.1} parent=1 // pred_check
      _
    $region27: #{tpu_custom_call.1} parent=1 // pred_check_branch
      %46 = sbr.rel (0) target = $region29
    $region28: #{tpu_custom_call.1} parent=1 // pred_region
      %48 = dma.done [#allocation7], 32
    $region29: #{tpu_custom_call.1} parent=1 // pred_fallthru
      _
    %p50 = scmp.eq.s32.totalorder 0, 0
    // Predicated region
    $region30: #{tpu_custom_call.1} parent=1 // pred_check
      %p51 = pneg %p50
    $region31: #{tpu_custom_call.1} parent=1 // pred_check_branch
      %53 = sbr.rel (%p51) target = $region33
    $region32: #{tpu_custom_call.1} parent=1 // pred_region
      %vm54 = vcmask 25600
      %55 = vst.msk [vmem:[#allocation2] sm:$0x3] %vm54, 0.0
    $region33: #{tpu_custom_call.1} parent=1 // pred_fallthru
      _
    %v56 = vld [vmem:[%s0] sm:$0xf]
    %v57 = vld [vmem:[%s0 + $0x4] sm:$0xf]
    %v58 = vld [vmem:[%s1] sm:$0xf]
    %v59 = vld [vmem:[%s1 + $0x4] sm:$0xf]
    %v62 = vunpack.c.l.b16 %v56
    %v63 = vunpack.c.l.b16 %v57
    %v64 = vpack.c.b16 %v63, %v62
    %v67 = vunpack.c.l.b16 %v58
    %v68 = vunpack.c.l.b16 %v59
    %v69 = vpack.c.b16 %v68, %v67
    %vm71 = vcmask 130048
    %v73 = vsel %vm71, %v64, 0
    %75 = vmatpush.bf16.msra.mxu0 0
    %76 = vmatpush.bf16.msra.mxu0 0
    %77 = vmatpush.bf16.msra.mxu0 0
    %78 = vmatpush.bf16.msra.mxu0 0
    %79 = vmatpush.bf16.msra.mxu0 0
    %80 = vmatpush.bf16.msra.mxu0 0
    %81 = vmatpush.bf16.msra.mxu0 0
    %82 = vmatpush.bf16.msra.mxu0 %v69
    %83 = vmatmul.bf16.gmra.mxu0 %v73
    %v84 = vpop.f32.mrf.mxu0
    %v85 = vadd.f32 0.0, %v84
    %v86 = vpop.f32.mrf.mxu0
    %v87 = vadd.f32 0.0, %v86
    %88 = vdwg.mxu0
    %v89 = vld [vmem:[#allocation2] sm:$0x3]
    %v90 = vld [vmem:[#allocation3] sm:$0x3]
    %v92 = vsel %vm71, %v90, 0
    %94 = vmatpush.msra.mxu0 0.0
    %95 = vmatpush.msra.mxu0 0.0
    %96 = vmatpush.msra.mxu0 0.0
    %97 = vmatpush.msra.mxu0 0.0
    %98 = vmatpush.msra.mxu0 0.0
    %99 = vmatpush.msra.mxu0 0.0
    %100 = vmatpush.msra.mxu0 0.0
    %101 = vmatpush.msra.mxu0 0.0
    %102 = vmatpush.msra.mxu0 0.0
    %103 = vmatpush.msra.mxu0 0.0
    %104 = vmatpush.msra.mxu0 0.0
    %105 = vmatpush.msra.mxu0 0.0
    %106 = vmatpush.msra.mxu0 0.0
    %107 = vmatpush.msra.mxu0 0.0
    %108 = vmatpush.msra.mxu0 %v87
    %109 = vmatpush.msra.mxu0 %v85
    %110 = vmatmul.f32.gmra.mxu0 %v92
    %v111 = vpop.f32.mrf.mxu0
    %v112 = vadd.f32 0.0, %v111
    %113 = vdwg.mxu0
    %v114 = vadd.f32 %v89, %v112
    %vm115 = vcmask 25600
    %116 = vst.msk [vmem:[#allocation2] sm:$0x3] %vm115, %v114
    // Predicated region
    $region34: #{tpu_custom_call.1} parent=1 // pred_check
      %p117 = pneg %p50
    $region35: #{tpu_custom_call.1} parent=1 // pred_check_branch
      %119 = sbr.rel (%p117) target = $region37
    $region36: #{tpu_custom_call.1} parent=1 // pred_region
      %v120 = vld [vmem:[#allocation2] sm:$0x3]
      %v121 = vld [vmem:[%s3] sm:$0xf]
      %v122 = vld [vmem:[#allocation6] sm:$0x3]
      %vm123 = vcmask 31744
      %v125 = vsel %vm123, %v120, 0
      %vm127 = vcmask 1043456
      %v129 = vsel %vm127, %v121, 0
      %131 = vmatpush.msra.mxu0 0.0
      %132 = vmatpush.msra.mxu0 0.0
      %133 = vmatpush.msra.mxu0 0.0
      %134 = vmatpush.msra.mxu0 0.0
      %135 = vmatpush.msra.mxu0 0.0
      %136 = vmatpush.msra.mxu0 0.0
      %137 = vmatpush.msra.mxu0 0.0
      %138 = vmatpush.msra.mxu0 0.0
      %139 = vmatpush.msra.mxu0 0.0
      %140 = vmatpush.msra.mxu0 0.0
      %141 = vmatpush.msra.mxu0 0.0
      %142 = vmatpush.msra.mxu0 0.0
      %143 = vmatpush.msra.mxu0 0.0
      %144 = vmatpush.msra.mxu0 0.0
      %145 = vmatpush.msra.mxu0 0.0
      %146 = vmatpush.msra.mxu0 %v129
      %147 = vmatmul.f32.gmra.mxu0 %v125
      %v148 = vpop.f32.mrf.mxu0
      %v149 = vadd.f32 %v122, %v148
      %150 = vdwg.mxu0
      %vm151 = vcmask 58368
      %152 = vst.msk [vmem:[#allocation8] sm:$0x3] %vm151, %v149
    $region37: #{tpu_custom_call.1} parent=1 // pred_fallthru
      _
    // Predicated region
    $region38: #{tpu_custom_call.1} parent=1 // pred_check
      _
    $region39: #{tpu_custom_call.1} parent=1 // pred_check_branch
      %154 = sbr.rel (0) target = $region41
    $region40: #{tpu_custom_call.1} parent=1 // pred_region
      %156 = vsyncadd [#allocation5], 0
      %s158 = sshll.u32 [#allocation8], 4
      %s159 = int_to_ptr.vmem [resolvable:$true] %s158
      %s160 = sshll.u32 %s5, 4
      %s161 = int_to_ptr.hbm [resolvable:$true] %s160
      %163 = dma.vmem_to_hbm [thread:$0]  %s159, 32, %s161, [#allocation5]
    $region41: #{tpu_custom_call.1} parent=1 // pred_fallthru
      _
    // Predicated region
    $region42: #{tpu_custom_call.1} parent=1 // pred_check
      _
    $region43: #{tpu_custom_call.1} parent=1 // pred_check_branch
      %165 = sbr.rel (0) target = $region45
    $region44: #{tpu_custom_call.1} parent=1 // pred_region
      %167 = dma.done [#allocation5], 32
    $region45: #{tpu_custom_call.1} parent=1 // pred_fallthru
      _
    %168 = vsyncpa [#allocation4], 1
    %169 = vsyncpa [#allocation7], 1
    %170 = vsyncpa [#allocation5], 1

</llo_original>
